<compile_context>
chip_gen: v5e
topology: v5e:2x2
jax: 0.10.0
libtpu: 0.0.40
codegen_flags: <defaults>
</compile_context>

<pallas_src>
import jax
import jax.numpy as jnp
import numpy as np
from jax.experimental import pallas as pl
from jax.experimental.pallas import tpu as pltpu

LANE = 128
SUBLANE = 8


def _round_up(n, m):
    return (n + m - 1) // m * m


def make_mlp_kernel(num_layers, bias_offsets, bias_widths):
    """Builds kernel: x -> [Linear -> ReLU] * (L-1) -> Linear (all in VMEM)."""

    def kernel(x_ref, *refs):
        w_refs = refs[:num_layers]            # bf16 (in_p, out_p) weights
        b_ref = refs[num_layers]              # f32 (1, sum(out_p)) fused biases
        y_ref = refs[num_layers + 1]          # f32 (TB, out_p_last) output

        h = x_ref[...].astype(jnp.bfloat16)
        for l in range(num_layers):
            off, width = bias_offsets[l], bias_widths[l]
            acc = jnp.dot(h, w_refs[l][...],
                          preferred_element_type=jnp.float32)
            acc = acc + b_ref[:, off:off + width]          # static, 128-aligned slice
            if l < num_layers - 1:
                h = jnp.maximum(acc, 0.0).astype(jnp.bfloat16)   # ReLU
            else:
                y_ref[...] = acc.astype(y_ref.dtype)

    return kernel


def init_params(key, in_d, out_d, hidden_dim=None):
    """PyTorch nn.Linear default init (uniform +/- 1/sqrt(fan_in)).

    Weights are stored as (in, out) so the kernel computes y = x @ W + b,
    equivalent to nn.Linear whose weight matrix is the transpose."""
    if hidden_dim is None:
        hidden_dim = [64]
    dims = [in_d] + list(hidden_dim) + [out_d]
    params = []
    for i in range(len(dims) - 1):
        key, kw, kb = jax.random.split(key, 3)
        bound = 1.0 / (dims[i] ** 0.5)
        w = jax.random.uniform(kw, (dims[i], dims[i + 1]), jnp.float32, -bound, bound)
        b = jax.random.uniform(kb, (dims[i + 1],), jnp.float32, -bound, bound)
        params.append((w, b))
    return params


def pad_and_cast_params(params):
    """Zero-pad every feature dim to a multiple of 128, cast weights to bf16,
    and concatenate all (padded) biases into one (1, total) f32 array."""
    dims = [params[0][0].shape[0]] + [w.shape[1] for w, _ in params]
    pdims = [_round_up(d, LANE) for d in dims]
    padded_w, padded_b = [], []
    for l, (w, b) in enumerate(params):
        wp = jnp.zeros((pdims[l], pdims[l + 1]), jnp.bfloat16)
        wp = wp.at[: w.shape[0], : w.shape[1]].set(w.astype(jnp.bfloat16))
        bp = jnp.zeros((1, pdims[l + 1]), jnp.float32)
        bp = bp.at[0, : b.shape[0]].set(b)
        padded_w.append(wp)
        padded_b.append(bp)
    bias_cat = jnp.concatenate(padded_b, axis=1)
    bias_widths = tuple(pdims[1:])
    bias_offsets = tuple(int(sum(pdims[1:1 + l])) for l in range(len(params)))
    return padded_w, bias_cat, tuple(dims), tuple(pdims), bias_offsets, bias_widths


def mlp_forward(x, padded_w, bias_cat, dims, pdims, bias_offsets, bias_widths,
                *, batch_tile=128):
    """Runs the padded, batch-tiled Pallas MLP and slices the padding off."""
    B, in_d = x.shape
    assert in_d == dims[0]
    num_layers = len(padded_w)
    out_d = dims[-1]

    # Batch tile: sublane-aligned, no larger than needed for tiny batches.
    tb = min(_round_up(batch_tile, SUBLANE), _round_up(B, SUBLANE))
    bp = _round_up(B, tb)
    x_p = jnp.pad(x, ((0, bp - B), (0, pdims[0] - in_d)))

    kernel = make_mlp_kernel(num_layers, bias_offsets, bias_widths)

    in_specs = [pl.BlockSpec((tb, pdims[0]), lambda i: (i, 0))]           # x: batch-tiled
    for l in range(num_layers):                                           # weights: resident
        in_specs.append(pl.BlockSpec((pdims[l], pdims[l + 1]), lambda i: (0, 0)))
    in_specs.append(pl.BlockSpec((1, bias_cat.shape[1]), lambda i: (0, 0)))  # fused biases

    y_p = pl.pallas_call(
        kernel,
        out_shape=jax.ShapeDtypeStruct((bp, pdims[-1]), jnp.float32),
        grid=(bp // tb,),
        in_specs=in_specs,
        out_specs=pl.BlockSpec((tb, pdims[-1]), lambda i: (i, 0)),
        compiler_params=pltpu.CompilerParams(
            dimension_semantics=("parallel",),          # shard batch across TCs (v7x)
            vmem_limit_bytes=32 * 1024 * 1024),         # safe on v7x's 64 MiB VMEM
    )(x_p, *padded_w, bias_cat)

    return y_p[:B, :out_d]


def mlp_reference_f32(x, params):
    """Pure-JAX f32 reference with exact module semantics."""
    h = x
    for l, (w, b) in enumerate(params):
        h = h @ w + b
        if l < len(params) - 1:
            h = jnp.maximum(h, 0.0)
    return h


def mlp_reference_bf16(x, params):
    """Pure-JAX reference that mirrors the kernel's bf16/f32-accum math."""
    h = x.astype(jnp.bfloat16)
    for l, (w, b) in enumerate(params):
        acc = jnp.dot(h, w.astype(jnp.bfloat16),
                      preferred_element_type=jnp.float32) + b
        if l < len(params) - 1:
            h = jnp.maximum(acc, 0.0).astype(jnp.bfloat16)
        else:
            h = acc
    return h


if __name__ == "__main__":
    # Small shapes consistent with the module: batch=2, in_d=100, default
    # hidden_dim=[64], out_d=10.
    B, in_d, out_d = 2, 100, 10
    hidden_dim = [64]

    key = jax.random.PRNGKey(0)
    kx, kp = jax.random.split(key)
    x = jax.random.normal(kx, (B, in_d), jnp.float32)
    params = init_params(kp, in_d, out_d, hidden_dim)
    padded = pad_and_cast_params(params)

    y = mlp_forward(x, *padded)
    jax.block_until_ready(y)
    assert y.shape == (B, out_d)
    np.testing.assert_allclose(np.asarray(y), np.asarray(mlp_reference_bf16(x, params)),
                               rtol=1e-2, atol=1e-2)
    np.testing.assert_allclose(np.asarray(y), np.asarray(mlp_reference_f32(x, params)),
                               rtol=5e-2, atol=5e-2)

    # Larger batch exercises the batch-tiled grid (weights stay VMEM-resident
    # across the 3 batch tiles; batch axis is "parallel").
    B2 = 260
    x2 = jax.random.normal(jax.random.PRNGKey(1), (B2, in_d), jnp.float32)
    y2 = mlp_forward(x2, *padded, batch_tile=128)
    jax.block_until_ready(y2)
    assert y2.shape == (B2, out_d)
    np.testing.assert_allclose(np.asarray(y2), np.asarray(mlp_reference_bf16(x2, params)),
                               rtol=1e-2, atol=1e-2)

    print("KERNEL_OK")
</pallas_src>

<mosaic_0001>
module attributes {stable_mosaic.version = 11 : i64} {
  func.func @kernel(%arg0: i32, %arg1: memref<8x128xf32, #tpu.memory_space<vmem>>, %arg2: memref<128x128xbf16, #tpu.memory_space<vmem>>, %arg3: memref<128x128xbf16, #tpu.memory_space<vmem>>, %arg4: memref<1x256xf32, #tpu.memory_space<vmem>>, %arg5: memref<8x128xf32, #tpu.memory_space<vmem>>) attributes {dimension_semantics = [#tpu.dimension_semantics<parallel>], iteration_bounds = array<i64: 1>, scalar_prefetch = 0 : i64, scratch_operands = 0 : i64, tpu.core_type = #tpu.core_type<tc>, window_params = [{transform_indices = @transform_0, window_bounds = array<i64: 8, 128>}, {pipeline_mode = #tpu.pipeline_mode<synchronous>, transform_indices = @transform_1, window_bounds = array<i64: 128, 128>}, {pipeline_mode = #tpu.pipeline_mode<synchronous>, transform_indices = @transform_2, window_bounds = array<i64: 128, 128>}, {pipeline_mode = #tpu.pipeline_mode<synchronous>, transform_indices = @transform_3, window_bounds = array<i64: 1, 256>}, {transform_indices = @transform_4, window_bounds = array<i64: 8, 128>}]} {
    %c0 = arith.constant 0 : index
    %c0_0 = arith.constant 0 : index
    %0 = vector.load %arg1[%c0, %c0_0] : memref<8x128xf32, #tpu.memory_space<vmem>>, vector<8x128xf32>
    %1 = arith.truncf %0 : vector<8x128xf32> to vector<8x128xbf16>
    %c0_1 = arith.constant 0 : index
    %c0_2 = arith.constant 0 : index
    %2 = vector.load %arg2[%c0_1, %c0_2] : memref<128x128xbf16, #tpu.memory_space<vmem>>, vector<128x128xbf16>
    %cst = arith.constant dense<0.000000e+00> : vector<8x128xf32>
    %3 = tpu.matmul %1, %2, %cst {dimension_numbers = #tpu.dot_dimension_numbers<[1], [0], [0], [1], [0, 0, 1, 1], [], []>} : vector<8x128xbf16>, vector<128x128xbf16>, vector<8x128xf32> -> vector<8x128xf32>
    %c0_3 = arith.constant 0 : index
    %c0_4 = arith.constant 0 : index
    %4 = vector.load %arg4[%c0_3, %c0_4] : memref<1x256xf32, #tpu.memory_space<vmem>>, vector<1x128xf32>
    %5 = vector.broadcast %4 : vector<1x128xf32> to vector<8x128xf32>
    %6 = arith.addf %3, %5 : vector<8x128xf32>
    %cst_5 = arith.constant 0.000000e+00 : f32
    %7 = vector.broadcast %cst_5 : f32 to vector<8x128xf32>
    %8 = arith.maximumf %6, %7 : vector<8x128xf32>
    %9 = arith.truncf %8 : vector<8x128xf32> to vector<8x128xbf16>
    %c0_6 = arith.constant 0 : index
    %c0_7 = arith.constant 0 : index
    %10 = vector.load %arg3[%c0_6, %c0_7] : memref<128x128xbf16, #tpu.memory_space<vmem>>, vector<128x128xbf16>
    %cst_8 = arith.constant dense<0.000000e+00> : vector<8x128xf32>
    %11 = tpu.matmul %9, %10, %cst_8 {dimension_numbers = #tpu.dot_dimension_numbers<[1], [0], [0], [1], [0, 0, 1, 1], [], []>} : vector<8x128xbf16>, vector<128x128xbf16>, vector<8x128xf32> -> vector<8x128xf32>
    %c0_9 = arith.constant 0 : index
    %c128 = arith.constant 128 : index
    %12 = vector.load %arg4[%c0_9, %c128] : memref<1x256xf32, #tpu.memory_space<vmem>>, vector<1x128xf32>
    %13 = vector.broadcast %12 : vector<1x128xf32> to vector<8x128xf32>
    %14 = arith.addf %11, %13 : vector<8x128xf32>
    %c0_10 = arith.constant 0 : index
    %c0_11 = arith.constant 0 : index
    %15 = vector.load %arg5[%c0_10, %c0_11] : memref<8x128xf32, #tpu.memory_space<vmem>>, vector<8x128xf32>
    tpu.vector_store %arg5[%c0_10, %c0_11], %14 {strides = array<i32>} : memref<8x128xf32, #tpu.memory_space<vmem>>, vector<8x128xf32>,
    return
  }
  func.func @transform_0(%arg0: i32) -> (i32, i32) {
    %c0_i32 = arith.constant 0 : i32
    %c0_i32_0 = arith.constant 0 : i32
    return %arg0, %c0_i32 : i32, i32
  }
  func.func @transform_1(%arg0: i32) -> (i32, i32) {
    %c0_i32 = arith.constant 0 : i32
    %c0_i32_0 = arith.constant 0 : i32
    %c0_i32_1 = arith.constant 0 : i32
    return %c0_i32, %c0_i32_0 : i32, i32
  }
  func.func @transform_2(%arg0: i32) -> (i32, i32) {
    %c0_i32 = arith.constant 0 : i32
    %c0_i32_0 = arith.constant 0 : i32
    %c0_i32_1 = arith.constant 0 : i32
    return %c0_i32, %c0_i32_0 : i32, i32
  }
  func.func @transform_3(%arg0: i32) -> (i32, i32) {
    %c0_i32 = arith.constant 0 : i32
    %c0_i32_0 = arith.constant 0 : i32
    %c0_i32_1 = arith.constant 0 : i32
    return %c0_i32, %c0_i32_0 : i32, i32
  }
  func.func @transform_4(%arg0: i32) -> (i32, i32) {
    %c0_i32 = arith.constant 0 : i32
    %c0_i32_0 = arith.constant 0 : i32
    return %arg0, %c0_i32 : i32, i32
  }
}

</mosaic_0001>

<llo_original>
// kernel: tpu_custom_call.1
$region0: #{tpu_custom_call.1}
  #allocation0 [shape = 'u32[]', space=smem, size = 0x4, offset = 0x4, fixed_abs, tag = 'smem constant byte address 0x4 - core index']
  #allocation1 [shape = 'u32[72,128]{1,0:T(1,128)}', space=vmem, size = 0x9000, scoped, tag = 'internal scratch']
  %s0 = inlined_call_operand.hbm [shape: f32[8,128], index: 0, kind: input, shape index: {}]
  %s1 = inlined_call_operand.hbm [shape: bf16[128,128], index: 1, kind: input, shape index: {}]
  %s2 = inlined_call_operand.hbm [shape: bf16[128,128], index: 2, kind: input, shape index: {}]
  %s3 = inlined_call_operand.vmem [shape: f32[1,256], index: 3, kind: input, shape index: {}]
  %s4 = inlined_call_operand.hbm [shape: f32[8,128], index: 4, kind: output, shape index: {}]
  %s5 = sld [smem:[#allocation0]]
  $region38: #{tpu_custom_call.1} parent=0
    _
  %s7 = ssub.s32 1, %s5
  %s8 = scalar_select 0, %s7, %s5
  $region1: #{tpu_custom_call.1} parent=0
    #allocation2 [shape = 'u8[4096]{0}', space=vmem, size = 0x1000, scoped, tag = 'input window, operand 0, single buffered']
    #allocation3 [shape = 's32[1]{0}', space=sflag, size = 0x4, scoped, tag = 'scoped memory for tpu_custom_call.1']
    #allocation4 [shape = 's32[1]{0}', space=sflag, size = 0x4, scoped, tag = 'scoped memory for tpu_custom_call.1']
    #allocation5 [shape = 'u8[32768]{0}', space=vmem, size = 0x8000, scoped, tag = 'input window, operand 1, single buffered']
    #allocation6 [shape = 's32[1]{0}', space=sflag, size = 0x4, scoped, tag = 'scoped memory for tpu_custom_call.1']
    #allocation7 [shape = 'u8[32768]{0}', space=vmem, size = 0x8000, scoped, tag = 'input window, operand 2, single buffered']
    #allocation8 [shape = 'u8[4096]{0}', space=vmem, size = 0x1000, scoped, tag = 'output window, operand 0, single buffered']
    %9 = vsyncpa [#allocation3], 0
    %10 = vsyncpa [#allocation6], 0
    %11 = vsyncpa [#allocation4], 0
    // Predicated region
    $region2: #{tpu_custom_call.1} parent=1 // pred_check
      _
    $region3: #{tpu_custom_call.1} parent=1 // pred_check_branch
      %13 = sbr.rel (0) target = $region5
    $region4: #{tpu_custom_call.1} parent=1 // pred_region
      %15 = vsyncadd [#allocation3], 0
      %s17 = sshll.u32 %s0, 4
      %s18 = int_to_ptr.hbm [resolvable:$true] %s17
      %s19 = sshll.u32 [#allocation2], 4
      %s20 = int_to_ptr.vmem [resolvable:$true] %s19
      %22 = dma.hbm_to_vmem [thread:$0]  %s18, 128, %s20, [#allocation3]
    $region5: #{tpu_custom_call.1} parent=1 // pred_fallthru
      _
    // Predicated region
    $region6: #{tpu_custom_call.1} parent=1 // pred_check
      _
    $region7: #{tpu_custom_call.1} parent=1 // pred_check_branch
      %24 = sbr.rel (0) target = $region9
    $region8: #{tpu_custom_call.1} parent=1 // pred_region
      %26 = vsyncadd [#allocation6], 0
      %s27 = sshll.u32 %s1, 4
      %s28 = int_to_ptr.hbm [resolvable:$true] %s27
      %s29 = sshll.u32 [#allocation5], 4
      %s30 = int_to_ptr.vmem [resolvable:$true] %s29
      %35 = dma.hbm_to_vmem [thread:$0]  %s28, 1024, %s30, [#allocation6], 64, 64, 4
    $region9: #{tpu_custom_call.1} parent=1 // pred_fallthru
      _
    // Predicated region
    $region10: #{tpu_custom_call.1} parent=1 // pred_check
      _
    $region11: #{tpu_custom_call.1} parent=1 // pred_check_branch
      %37 = sbr.rel (0) target = $region13
    $region12: #{tpu_custom_call.1} parent=1 // pred_region
      %39 = vsyncadd [#allocation6], 0
      %s40 = sshll.u32 %s2, 4
      %s41 = int_to_ptr.hbm [resolvable:$true] %s40
      %s42 = sshll.u32 [#allocation7], 4
      %s43 = int_to_ptr.vmem [resolvable:$true] %s42
      %48 = dma.hbm_to_vmem [thread:$0]  %s41, 1024, %s43, [#allocation6], 64, 64, 4
    $region13: #{tpu_custom_call.1} parent=1 // pred_fallthru
      _
    // Predicated region
    $region14: #{tpu_custom_call.1} parent=1 // pred_check
      _
    $region15: #{tpu_custom_call.1} parent=1 // pred_check_branch
      %50 = sbr.rel (0) target = $region17
    $region16: #{tpu_custom_call.1} parent=1 // pred_region
      _
    $region17: #{tpu_custom_call.1} parent=1 // pred_fallthru
      _
    // Predicated region
    $region18: #{tpu_custom_call.1} parent=1 // pred_check
      _
    $region19: #{tpu_custom_call.1} parent=1 // pred_check_branch
      %52 = sbr.rel (0) target = $region21
    $region20: #{tpu_custom_call.1} parent=1 // pred_region
      %54 = dma.done [#allocation3], 128
    $region21: #{tpu_custom_call.1} parent=1 // pred_fallthru
      _
    // Predicated region
    $region22: #{tpu_custom_call.1} parent=1 // pred_check
      _
    $region23: #{tpu_custom_call.1} parent=1 // pred_check_branch
      %56 = sbr.rel (0) target = $region25
    $region24: #{tpu_custom_call.1} parent=1 // pred_region
      %58 = dma.done [#allocation6], 1024
    $region25: #{tpu_custom_call.1} parent=1 // pred_fallthru
      _
    // Predicated region
    $region26: #{tpu_custom_call.1} parent=1 // pred_check
      _
    $region27: #{tpu_custom_call.1} parent=1 // pred_check_branch
      %60 = sbr.rel (0) target = $region29
    $region28: #{tpu_custom_call.1} parent=1 // pred_region
      %62 = dma.done [#allocation6], 1024
    $region29: #{tpu_custom_call.1} parent=1 // pred_fallthru
      _
    %v63 = vld [vmem:[#allocation2] sm:$0xff]
    %v64 = vpack.c.bf16 %v63, %v63
    %v65 = vld [vmem:[#allocation5] sm:$0xf]
    %v66 = vld [vmem:[#allocation5 + $0x4] sm:$0xf]
    %v67 = vld [vmem:[#allocation5 + $0x8] sm:$0xf]
    %v68 = vld [vmem:[#allocation5 + $0xc] sm:$0xf]
    %v69 = vld [vmem:[#allocation5 + $0x10] sm:$0xf]
    %v70 = vld [vmem:[#allocation5 + $0x14] sm:$0xf]
    %v71 = vld [vmem:[#allocation5 + $0x18] sm:$0xf]
    %v72 = vld [vmem:[#allocation5 + $0x1c] sm:$0xf]
    %v73 = vld [vmem:[#allocation5 + $0x20] sm:$0xf]
    %v74 = vld [vmem:[#allocation5 + $0x24] sm:$0xf]
    %v75 = vld [vmem:[#allocation5 + $0x28] sm:$0xf]
    %v76 = vld [vmem:[#allocation5 + $0x2c] sm:$0xf]
    %v77 = vld [vmem:[#allocation5 + $0x30] sm:$0xf]
    %v78 = vld [vmem:[#allocation5 + $0x34] sm:$0xf]
    %v79 = vld [vmem:[#allocation5 + $0x38] sm:$0xf]
    %v80 = vld [vmem:[#allocation5 + $0x3c] sm:$0xf]
    %v81 = vld [vmem:[%s3] sm:$0x1]
    %v83 = vperm.slane %v81, 0
    %v101 = vunpack.c.l.b16 %v65
    %v102 = vunpack.c.l.b16 %v66
    %v103 = vunpack.c.l.b16 %v67
    %v104 = vunpack.c.l.b16 %v68
    %v105 = vunpack.c.l.b16 %v69
    %v106 = vunpack.c.l.b16 %v70
    %v107 = vunpack.c.l.b16 %v71
    %v108 = vunpack.c.l.b16 %v72
    %v109 = vunpack.c.l.b16 %v73
    %v110 = vunpack.c.l.b16 %v74
    %v111 = vunpack.c.l.b16 %v75
    %v112 = vunpack.c.l.b16 %v76
    %v113 = vunpack.c.l.b16 %v77
    %v114 = vunpack.c.l.b16 %v78
    %v115 = vunpack.c.l.b16 %v79
    %v116 = vunpack.c.l.b16 %v80
    %v117 = vpack.c.b16 %v102, %v101
    %v118 = vpack.c.b16 %v104, %v103
    %v119 = vpack.c.b16 %v106, %v105
    %v120 = vpack.c.b16 %v108, %v107
    %v121 = vpack.c.b16 %v110, %v109
    %v122 = vpack.c.b16 %v112, %v111
    %v123 = vpack.c.b16 %v114, %v113
    %v124 = vpack.c.b16 %v116, %v115
    %133 = vmatpush.bf16.msra.mxu0 %v124
    %134 = vmatpush.bf16.msra.mxu0 %v123
    %135 = vmatpush.bf16.msra.mxu0 %v122
    %136 = vmatpush.bf16.msra.mxu0 %v121
    %137 = vmatpush.bf16.msra.mxu0 %v120
    %138 = vmatpush.bf16.msra.mxu0 %v119
    %139 = vmatpush.bf16.msra.mxu0 %v118
    %140 = vmatpush.bf16.msra.mxu0 %v117
    %141 = vmatmul.bf16.gmra.mxu0 %v64
    %v142 = vpop.f32.mrf.mxu0
    %v143 = vadd.f32 %v83, %v142
    %v144 = vpop.f32.mrf.mxu0
    %145 = vdwg.mxu0
    %v146 = vmax.f32 %v143, 0.0
    %v147 = vpack.c.bf16 %v146, %v146
    %v148 = vld [vmem:[#allocation7] sm:$0xf]
    %v149 = vld [vmem:[#allocation7 + $0x4] sm:$0xf]
    %v150 = vld [vmem:[#allocation7 + $0x8] sm:$0xf]
    %v151 = vld [vmem:[#allocation7 + $0xc] sm:$0xf]
    %v152 = vld [vmem:[#allocation7 + $0x10] sm:$0xf]
    %v153 = vld [vmem:[#allocation7 + $0x14] sm:$0xf]
    %v154 = vld [vmem:[#allocation7 + $0x18] sm:$0xf]
    %v155 = vld [vmem:[#allocation7 + $0x1c] sm:$0xf]
    %v156 = vld [vmem:[#allocation7 + $0x20] sm:$0xf]
    %v157 = vld [vmem:[#allocation7 + $0x24] sm:$0xf]
    %v158 = vld [vmem:[#allocation7 + $0x28] sm:$0xf]
    %v159 = vld [vmem:[#allocation7 + $0x2c] sm:$0xf]
    %v160 = vld [vmem:[#allocation7 + $0x30] sm:$0xf]
    %v161 = vld [vmem:[#allocation7 + $0x34] sm:$0xf]
    %v162 = vld [vmem:[#allocation7 + $0x38] sm:$0xf]
    %v163 = vld [vmem:[#allocation7 + $0x3c] sm:$0xf]
    %v164 = vld [vmem:[%s3 + $0x1] sm:$0x1]
    %v166 = vperm.slane %v164, 0
    %v184 = vunpack.c.l.b16 %v148
    %v185 = vunpack.c.l.b16 %v149
    %v186 = vunpack.c.l.b16 %v150
    %v187 = vunpack.c.l.b16 %v151
    %v188 = vunpack.c.l.b16 %v152
    %v189 = vunpack.c.l.b16 %v153
    %v190 = vunpack.c.l.b16 %v154
    %v191 = vunpack.c.l.b16 %v155
    %v192 = vunpack.c.l.b16 %v156
    %v193 = vunpack.c.l.b16 %v157
    %v194 = vunpack.c.l.b16 %v158
    %v195 = vunpack.c.l.b16 %v159
    %v196 = vunpack.c.l.b16 %v160
    %v197 = vunpack.c.l.b16 %v161
    %v198 = vunpack.c.l.b16 %v162
    %v199 = vunpack.c.l.b16 %v163
    %v200 = vpack.c.b16 %v185, %v184
    %v201 = vpack.c.b16 %v187, %v186
    %v202 = vpack.c.b16 %v189, %v188
    %v203 = vpack.c.b16 %v191, %v190
    %v204 = vpack.c.b16 %v193, %v192
    %v205 = vpack.c.b16 %v195, %v194
    %v206 = vpack.c.b16 %v197, %v196
    %v207 = vpack.c.b16 %v199, %v198
    %216 = vmatpush.bf16.msra.mxu0 %v207
    %217 = vmatpush.bf16.msra.mxu0 %v206
    %218 = vmatpush.bf16.msra.mxu0 %v205
    %219 = vmatpush.bf16.msra.mxu0 %v204
    %220 = vmatpush.bf16.msra.mxu0 %v203
    %221 = vmatpush.bf16.msra.mxu0 %v202
    %222 = vmatpush.bf16.msra.mxu0 %v201
    %223 = vmatpush.bf16.msra.mxu0 %v200
    %224 = vmatmul.bf16.gmra.mxu0 %v147
    %v225 = vpop.f32.mrf.mxu0
    %v226 = vadd.f32 %v166, %v225
    %v227 = vpop.f32.mrf.mxu0
    %228 = vdwg.mxu0
    %229 = vst [vmem:[#allocation8] sm:$0xff] %v226
    // Predicated region
    $region30: #{tpu_custom_call.1} parent=1 // pred_check
      _
    $region31: #{tpu_custom_call.1} parent=1 // pred_check_branch
      %231 = sbr.rel (0) target = $region33
    $region32: #{tpu_custom_call.1} parent=1 // pred_region
      %233 = vsyncadd [#allocation4], 0
      %s235 = sshll.u32 [#allocation8], 4
      %s236 = int_to_ptr.vmem [resolvable:$true] %s235
      %s237 = sshll.u32 %s4, 4
      %s238 = int_to_ptr.hbm [resolvable:$true] %s237
      %240 = dma.vmem_to_hbm [thread:$0]  %s236, 128, %s238, [#allocation4]
    $region33: #{tpu_custom_call.1} parent=1 // pred_fallthru
      _
    // Predicated region
    $region34: #{tpu_custom_call.1} parent=1 // pred_check
      _
    $region35: #{tpu_custom_call.1} parent=1 // pred_check_branch
      %242 = sbr.rel (0) target = $region37
    $region36: #{tpu_custom_call.1} parent=1 // pred_region
      %244 = dma.done [#allocation4], 128
    $region37: #{tpu_custom_call.1} parent=1 // pred_fallthru
      _
    %245 = vsyncpa [#allocation3], 1
    %246 = vsyncpa [#allocation6], 1
    %247 = vsyncpa [#allocation4], 1

</llo_original>
